<compile_context>
chip_gen: v5e
topology: v5e:2x2
jax: 0.10.0
libtpu: 0.0.40
codegen_flags: <defaults>
</compile_context>

<pallas_src>
import functools

import jax
import jax.numpy as jnp
from jax import lax
from jax.experimental import pallas as pl
from jax.experimental.pallas import tpu as pltpu


def _rnd8(n):
    return (n + 7) // 8 * 8


def _residual_kernel(x_ref, aff_ref, w1_ref, w2_ref, w3_ref, mask_ref,
                     o_ref, stack_ref, *, W, cmid_p, need_skip, mm_dtype):
    L = x_ref.shape[1]                       # images_per_block * H * W lanes
    x = x_ref[...]                           # (Cin_p, L) f32, lane-dense

    # ---- bn1 (folded per-channel affine) + relu.  Pad channel Cin has
    # (scale, shift) = (0, 1), so row Cin of `a` is an all-ones bias channel.
    a = jnp.maximum(x * aff_ref[:, 0:1] + aff_ref[:, 1:2], 0.0)

    # ---- conv1 (1x1, bn2 scale folded) + relu.  conv1/bn2 bias rides the
    # ones column; row Cmid of w1 regenerates an all-ones row in h.
    h = jnp.dot(w1_ref[...], a.astype(mm_dtype),
                preferred_element_type=jnp.float32)
    h = jnp.maximum(h, 0.0)                  # (Cmid_p, L), row Cmid == 1

    # ---- conv2 (3x3, stride 1, pad 1): stack the 9 rolled + border-masked
    # taps along sublanes into one VMEM scratch, then contract with a single
    # wide-K matmul.  Rolls run over the whole batch*HW lane axis; any
    # cross-image wrap lands only on border lanes the per-image masks zero.
    for k in range(9):
        dy, dx = k // 3 - 1, k % 3 - 1
        if dy == 0 and dx == 0:
            piece = h
        else:
            piece = (pltpu.roll(h, (-(dy * W + dx)) % L, 1)
                     * mask_ref[k:k + 1, :])
        stack_ref[k * cmid_p:(k + 1) * cmid_p, :] = piece
    acc = jnp.dot(w2_ref[...], stack_ref[...].astype(mm_dtype),
                  preferred_element_type=jnp.float32)

    # ---- bn3 (folded) + relu.  Row Cmid of acc is exactly 1 -> bias channel
    # for the final matmul.
    h2 = jnp.maximum(acc, 0.0)               # (Cmid_p, L), row Cmid == 1

    # ---- conv3 (1x1) + bias (+ skip conv) as ONE matmul.
    if need_skip:
        cat = jnp.concatenate([h2, x], axis=0).astype(mm_dtype)
        out = jnp.dot(w3_ref[...], cat, preferred_element_type=jnp.float32)
    else:
        out = jnp.dot(w3_ref[...], h2.astype(mm_dtype),
                      preferred_element_type=jnp.float32)
        out = out + x[:o_ref.shape[0], :]    # identity residual
    o_ref[...] = out                         # (Cout_p, L) lane-dense store


def _fold_bn(p, eps=1e-5):
    gamma, beta, mean, var = p
    s = gamma / jnp.sqrt(var + eps)
    return s, beta - mean * s


def _border_masks(H, W, images_per_block):
    """(9, images_per_block*H*W) f32 0/1 masks in per-image coordinates."""
    s = jnp.arange(H * W, dtype=jnp.int32)
    y, x = s // W, s % W
    rows = []
    for k in range(9):
        dy, dx = k // 3 - 1, k % 3 - 1
        m = (y + dy >= 0) & (y + dy < H) & (x + dx >= 0) & (x + dx < W)
        rows.append(m)
    m = jnp.stack(rows).astype(jnp.float32)          # (9, HW)
    return jnp.tile(m, (1, images_per_block))


def _images_per_block(N, cin_p, cmid_p, cout_p, HW,
                      vmem_budget=16 * 1024 * 1024):
    """How many images to fold into the lane axis of one grid step."""
    per_image = 4 * HW * (2 * (cin_p + cout_p)   # in/out blocks (dbl-buffered)
                          + 2 * 9                # border-mask operand
                          + 9 * cmid_p           # stacked-tap scratch
                          + cin_p + 4 * cmid_p)  # live intermediates
    max_ipb = max(1, vmem_budget // per_image)
    divisors = [d for d in range(1, N + 1) if N % d == 0 and d <= max_ipb] or [1]
    # Prefer >= 2 grid steps so both v7x TensorCores get work; negligible
    # per-step cost on single-TC v5e/v6e.
    two_plus = [d for d in divisors if N // d >= 2]
    ipb = max(two_plus) if two_plus else max(divisors)
    if (ipb * HW) % 128 != 0 and ipb != N:           # keep lanes 128-aligned
        ipb = N
    return ipb


@functools.partial(jax.jit, static_argnames=("matmul_dtype",))
def residual_forward(x_nchw, params, matmul_dtype=jnp.bfloat16):
    """x_nchw: (N, Cin, H, W) float32.  Returns (N, Cout, H, W) float32."""
    N, Cin, H, W = x_nchw.shape
    HW = H * W

    w1, b1 = params['conv1']        # (Cmid, Cin), (Cmid,)
    w2, b2 = params['conv2']        # (Cmid, Cmid, 3, 3) OIHW, (Cmid,)
    w3, b3 = params['conv3']        # (Cout, Cmid), (Cout,)
    Cmid, Cout = w1.shape[0], w3.shape[0]
    need_skip = (Cin != Cout)

    # Channel padding: +1 channel hosts the all-ones bias row, then round up
    # to a multiple of 8 sublanes so all slabs fill whole vregs.
    Cin_p, Cmid_p, Cout_p = _rnd8(Cin + 1), _rnd8(Cmid + 1), _rnd8(Cout)

    s1, t1 = _fold_bn(params['bn1'])
    s2, t2 = _fold_bn(params['bn2'])
    s3, t3 = _fold_bn(params['bn3'])

    # bn1 affine; pad row Cin -> constant 1 after affine+relu.
    aff = jnp.zeros((Cin_p, 2), jnp.float32)
    aff = aff.at[:Cin, 0].set(s1).at[:Cin, 1].set(t1).at[Cin, 1].set(1.0)

    # conv1 with bn2 scale folded; bias in the ones column; row Cmid
    # regenerates the ones channel.
    w1a = jnp.zeros((Cmid_p, Cin_p), jnp.float32)
    w1a = (w1a.at[:Cmid, :Cin].set(w1 * s2[:, None])
              .at[:Cmid, Cin].set(s2 * b1 + t2)
              .at[Cmid, Cin].set(1.0))

    # conv2: all 9 taps flattened along K -> (Cmid_p, 9*Cmid_p); bn3 scale
    # folded, its shift via the (center-tap, ones-row) column, and row Cmid
    # regenerates the ones channel for conv3's bias.
    w2t = (jnp.transpose(w2, (2, 3, 0, 1)).reshape(9, Cmid, Cmid)
           * s3[None, :, None])
    w2f = jnp.zeros((Cmid_p, 9, Cmid_p), jnp.float32)
    w2f = (w2f.at[:Cmid, :, :Cmid].set(jnp.transpose(w2t, (1, 0, 2)))
              .at[:Cmid, 4, Cmid].set(s3 * b2 + t3)
              .at[Cmid, 4, Cmid].set(1.0))
    w2f = w2f.reshape(Cmid_p, 9 * Cmid_p)

    # conv3 (+ skip conv merged along K when needed) with bias column.
    if need_skip:
        ws, bs = params['skip']
        w3a = jnp.zeros((Cout_p, Cmid_p + Cin_p), jnp.float32)
        w3a = (w3a.at[:Cout, :Cmid].set(w3)
                  .at[:Cout, Cmid].set(b3 + bs)
                  .at[:Cout, Cmid_p:Cmid_p + Cin].set(ws))
    else:
        w3a = jnp.zeros((Cout_p, Cmid_p), jnp.float32)
        w3a = w3a.at[:Cout, :Cmid].set(w3).at[:Cout, Cmid].set(b3)

    mm = matmul_dtype
    w1a, w2f, w3a = w1a.astype(mm), w2f.astype(mm), w3a.astype(mm)

    # Batch folded into the lane axis: (N, Cin, H, W) -> (Cin_p, N*HW).
    x_cl = jnp.transpose(x_nchw, (1, 0, 2, 3)).reshape(Cin, N * HW)
    x_cl = jnp.pad(x_cl, ((0, Cin_p - Cin), (0, 0)))

    ipb = _images_per_block(N, Cin_p, Cmid_p, Cout_p, HW)
    L_blk = ipb * HW
    masks = _border_masks(H, W, ipb)                 # (9, L_blk)

    kernel = functools.partial(_residual_kernel, W=W, cmid_p=Cmid_p,
                               need_skip=need_skip, mm_dtype=mm)

    out_cl = pl.pallas_call(
        kernel,
        out_shape=jax.ShapeDtypeStruct((Cout_p, N * HW), jnp.float32),
        grid_spec=pltpu.PrefetchScalarGridSpec(
            num_scalar_prefetch=0,
            grid=(N // ipb,),
            in_specs=[
                pl.BlockSpec((Cin_p, L_blk), lambda g: (0, g)),
                pl.BlockSpec(aff.shape, lambda g: (0, 0)),
                pl.BlockSpec(w1a.shape, lambda g: (0, 0)),
                pl.BlockSpec(w2f.shape, lambda g: (0, 0)),
                pl.BlockSpec(w3a.shape, lambda g: (0, 0)),
                pl.BlockSpec(masks.shape, lambda g: (0, 0)),
            ],
            out_specs=pl.BlockSpec((Cout_p, L_blk), lambda g: (0, g)),
            scratch_shapes=[pltpu.VMEM((9 * Cmid_p, L_blk), jnp.float32)],
        ),
        compiler_params=pltpu.CompilerParams(
            dimension_semantics=("parallel",),
            vmem_limit_bytes=32 * 1024 * 1024),
    )(x_cl, aff, w1a, w2f, w3a, masks)

    out = out_cl[:Cout].reshape(Cout, N, H, W)
    return jnp.transpose(out, (1, 0, 2, 3))


def residual_reference(x, params, need_skip):
    """Plain-JAX NCHW reference for correctness checking (eval-mode BN)."""
    eps = 1e-5

    def bn(h, p):
        g, b, m, v = p
        s = g / jnp.sqrt(v + eps)
        return h * s[None, :, None, None] + (b - m * s)[None, :, None, None]

    w1, b1 = params['conv1']
    w2, b2 = params['conv2']
    w3, b3 = params['conv3']

    if need_skip:
        ws, bs = params['skip']
        residual = jnp.einsum('nchw,oc->nohw', x, ws) + bs[None, :, None, None]
    else:
        residual = x

    h = jax.nn.relu(bn(x, params['bn1']))
    h = jnp.einsum('nchw,oc->nohw', h, w1) + b1[None, :, None, None]
    h = jax.nn.relu(bn(h, params['bn2']))
    h = lax.conv_general_dilated(
        h, w2, (1, 1), 'SAME',
        dimension_numbers=('NCHW', 'OIHW', 'NCHW')) + b2[None, :, None, None]
    h = jax.nn.relu(bn(h, params['bn3']))
    h = jnp.einsum('nchw,oc->nohw', h, w3) + b3[None, :, None, None]
    return h + residual


def init_params(key, inp_dim, out_dim):
    mid = out_dim // 2
    ks = jax.random.split(key, 11)
    nrm = lambda k, shape, s: s * jax.random.normal(k, shape, jnp.float32)
    uni = lambda k, shape, lo, hi: jax.random.uniform(k, shape, jnp.float32,
                                                      lo, hi)

    def bn_params(k, c):
        k0, k1, k2, k3 = jax.random.split(k, 4)
        return (uni(k0, (c,), 0.5, 1.5), nrm(k1, (c,), 0.1),
                nrm(k2, (c,), 0.1), uni(k3, (c,), 0.5, 1.5))

    params = {
        'bn1': bn_params(ks[0], inp_dim),
        'bn2': bn_params(ks[1], mid),
        'bn3': bn_params(ks[2], mid),
        'conv1': (nrm(ks[3], (mid, inp_dim), 0.3), nrm(ks[4], (mid,), 0.1)),
        'conv2': (nrm(ks[5], (mid, mid, 3, 3), 0.2), nrm(ks[6], (mid,), 0.1)),
        'conv3': (nrm(ks[7], (out_dim, mid), 0.3), nrm(ks[8], (out_dim,), 0.1)),
    }
    if inp_dim != out_dim:
        params['skip'] = (nrm(ks[9], (out_dim, inp_dim), 0.3),
                          nrm(ks[10], (out_dim,), 0.1))
    return params


if __name__ == "__main__":
    key = jax.random.PRNGKey(0)
    kx1, kp1, kx2, kp2, kx3 = jax.random.split(key, 5)

    # Case 1: inp_dim != out_dim (skip conv merged into conv3)
    N, inp_dim, out_dim, H, W = 2, 4, 8, 16, 16
    x = jax.random.normal(kx1, (N, inp_dim, H, W), jnp.float32)
    params = init_params(kp1, inp_dim, out_dim)
    ref = residual_reference(x, params, need_skip=True)

    out = jax.block_until_ready(
        residual_forward(x, params, matmul_dtype=jnp.float32))
    assert out.shape == (N, out_dim, H, W), out.shape
    assert jnp.allclose(out, ref, atol=1e-3, rtol=1e-3), \
        float(jnp.max(jnp.abs(out - ref)))

    out_bf = jax.block_until_ready(
        residual_forward(x, params, matmul_dtype=jnp.bfloat16))
    assert jnp.allclose(out_bf, ref, atol=5e-2, rtol=5e-2), \
        float(jnp.max(jnp.abs(out_bf - ref)))

    # Case 2: inp_dim == out_dim (identity skip path)
    x2 = jax.random.normal(kx2, (N, 8, H, W), jnp.float32)
    params2 = init_params(kp2, 8, 8)
    ref2 = residual_reference(x2, params2, need_skip=False)

    out2 = jax.block_until_ready(
        residual_forward(x2, params2, matmul_dtype=jnp.float32))
    assert out2.shape == (N, 8, H, W), out2.shape
    assert jnp.allclose(out2, ref2, atol=1e-3, rtol=1e-3), \
        float(jnp.max(jnp.abs(out2 - ref2)))

    out2_bf = jax.block_until_ready(
        residual_forward(x2, params2, matmul_dtype=jnp.bfloat16))
    assert jnp.allclose(out2_bf, ref2, atol=5e-2, rtol=5e-2), \
        float(jnp.max(jnp.abs(out2_bf - ref2)))

    # Case 3: batch folded into the lane axis (2 images per grid step),
    # exercising the per-image border masks against cross-image rolls.
    x3 = jax.random.normal(kx3, (4, inp_dim, H, W), jnp.float32)
    ref3 = residual_reference(x3, params, need_skip=True)
    out3 = jax.block_until_ready(
        residual_forward(x3, params, matmul_dtype=jnp.float32))
    assert out3.shape == (4, out_dim, H, W), out3.shape
    assert jnp.allclose(out3, ref3, atol=1e-3, rtol=1e-3), \
        float(jnp.max(jnp.abs(out3 - ref3)))

    print("KERNEL_OK")
</pallas_src>

<mosaic_0001>
module attributes {stable_mosaic.version = 11 : i64} {
  func.func @_residual_kernel(%arg0: i32, %arg1: memref<8x256xf32, #tpu.memory_space<vmem>>, %arg2: memref<8x2xf32, #tpu.memory_space<vmem>>, %arg3: memref<8x8xf32, #tpu.memory_space<vmem>>, %arg4: memref<8x72xf32, #tpu.memory_space<vmem>>, %arg5: memref<8x16xf32, #tpu.memory_space<vmem>>, %arg6: memref<9x256xf32, #tpu.memory_space<vmem>>, %arg7: memref<8x256xf32, #tpu.memory_space<vmem>>, %arg8: memref<72x256xf32, #tpu.memory_space<vmem>>) attributes {dimension_semantics = [#tpu.dimension_semantics<parallel>], iteration_bounds = array<i64: 2>, scalar_prefetch = 0 : i64, scratch_operands = 1 : i64, tpu.core_type = #tpu.core_type<tc>, window_params = [{transform_indices = @transform_0, window_bounds = array<i64: 8, 256>}, {pipeline_mode = #tpu.pipeline_mode<synchronous>, transform_indices = @transform_1, window_bounds = array<i64: 8, 2>}, {pipeline_mode = #tpu.pipeline_mode<synchronous>, transform_indices = @transform_2, window_bounds = array<i64: 8, 8>}, {pipeline_mode = #tpu.pipeline_mode<synchronous>, transform_indices = @transform_3, window_bounds = array<i64: 8, 72>}, {pipeline_mode = #tpu.pipeline_mode<synchronous>, transform_indices = @transform_4, window_bounds = array<i64: 8, 16>}, {pipeline_mode = #tpu.pipeline_mode<synchronous>, transform_indices = @transform_5, window_bounds = array<i64: 9, 256>}, {transform_indices = @transform_6, window_bounds = array<i64: 8, 256>}]} {
    %c0 = arith.constant 0 : index
    %c0_0 = arith.constant 0 : index
    %0 = vector.load %arg1[%c0, %c0_0] : memref<8x256xf32, #tpu.memory_space<vmem>>, vector<8x256xf32>
    %c0_1 = arith.constant 0 : index
    %c0_2 = arith.constant 0 : index
    %1 = vector.load %arg2[%c0_1, %c0_2] : memref<8x2xf32, #tpu.memory_space<vmem>>, vector<8x1xf32>
    %2 = vector.broadcast %1 : vector<8x1xf32> to vector<8x256xf32>
    %3 = arith.mulf %0, %2 : vector<8x256xf32>
    %c0_3 = arith.constant 0 : index
    %c1 = arith.constant 1 : index
    %4 = vector.load %arg2[%c0_3, %c1] : memref<8x2xf32, #tpu.memory_space<vmem>>, vector<8x1xf32>
    %5 = vector.broadcast %4 : vector<8x1xf32> to vector<8x256xf32>
    %6 = arith.addf %3, %5 : vector<8x256xf32>
    %cst = arith.constant 0.000000e+00 : f32
    %7 = vector.broadcast %cst : f32 to vector<8x256xf32>
    %8 = arith.maximumf %6, %7 : vector<8x256xf32>
    %c0_4 = arith.constant 0 : index
    %c0_5 = arith.constant 0 : index
    %9 = vector.load %arg3[%c0_4, %c0_5] : memref<8x8xf32, #tpu.memory_space<vmem>>, vector<8x8xf32>
    %cst_6 = arith.constant dense<0.000000e+00> : vector<8x256xf32>
    %10 = tpu.matmul %9, %8, %cst_6 {dimension_numbers = #tpu.dot_dimension_numbers<[1], [0], [0], [1], [0, 0, 1, 1], [], []>} : vector<8x8xf32>, vector<8x256xf32>, vector<8x256xf32> -> vector<8x256xf32>
    %cst_7 = arith.constant 0.000000e+00 : f32
    %11 = vector.broadcast %cst_7 : f32 to vector<8x256xf32>
    %12 = arith.maximumf %10, %11 : vector<8x256xf32>
    %c17_i32 = arith.constant 17 : i32
    %13 = tpu.dynamic_rotate %12 by %c17_i32 dim 1 : vector<8x256xf32>, i32 -> vector<8x256xf32>
    %c0_8 = arith.constant 0 : index
    %c0_9 = arith.constant 0 : index
    %14 = vector.load %arg6[%c0_8, %c0_9] : memref<9x256xf32, #tpu.memory_space<vmem>>, vector<1x256xf32>
    %15 = vector.broadcast %14 : vector<1x256xf32> to vector<8x256xf32>
    %16 = arith.mulf %13, %15 : vector<8x256xf32>
    %c0_10 = arith.constant 0 : index
    %c0_11 = arith.constant 0 : index
    %17 = vector.load %arg8[%c0_10, %c0_11] : memref<72x256xf32, #tpu.memory_space<vmem>>, vector<8x256xf32>
    tpu.vector_store %arg8[%c0_10, %c0_11], %16 {strides = array<i32>} : memref<72x256xf32, #tpu.memory_space<vmem>>, vector<8x256xf32>,
    %c16_i32 = arith.constant 16 : i32
    %18 = tpu.dynamic_rotate %12 by %c16_i32 dim 1 : vector<8x256xf32>, i32 -> vector<8x256xf32>
    %c1_12 = arith.constant 1 : index
    %c0_13 = arith.constant 0 : index
    %19 = vector.load %arg6[%c1_12, %c0_13] : memref<9x256xf32, #tpu.memory_space<vmem>>, vector<1x256xf32>
    %20 = vector.broadcast %19 : vector<1x256xf32> to vector<8x256xf32>
    %21 = arith.mulf %18, %20 : vector<8x256xf32>
    %c8 = arith.constant 8 : index
    %c0_14 = arith.constant 0 : index
    %22 = vector.load %arg8[%c8, %c0_14] : memref<72x256xf32, #tpu.memory_space<vmem>>, vector<8x256xf32>
    tpu.vector_store %arg8[%c8, %c0_14], %21 {strides = array<i32>} : memref<72x256xf32, #tpu.memory_space<vmem>>, vector<8x256xf32>,
    %c15_i32 = arith.constant 15 : i32
    %23 = tpu.dynamic_rotate %12 by %c15_i32 dim 1 : vector<8x256xf32>, i32 -> vector<8x256xf32>
    %c2 = arith.constant 2 : index
    %c0_15 = arith.constant 0 : index
    %24 = vector.load %arg6[%c2, %c0_15] : memref<9x256xf32, #tpu.memory_space<vmem>>, vector<1x256xf32>
    %25 = vector.broadcast %24 : vector<1x256xf32> to vector<8x256xf32>
    %26 = arith.mulf %23, %25 : vector<8x256xf32>
    %c16 = arith.constant 16 : index
    %c0_16 = arith.constant 0 : index
    %27 = vector.load %arg8[%c16, %c0_16] : memref<72x256xf32, #tpu.memory_space<vmem>>, vector<8x256xf32>
    tpu.vector_store %arg8[%c16, %c0_16], %26 {strides = array<i32>} : memref<72x256xf32, #tpu.memory_space<vmem>>, vector<8x256xf32>,
    %c1_i32 = arith.constant 1 : i32
    %28 = tpu.dynamic_rotate %12 by %c1_i32 dim 1 : vector<8x256xf32>, i32 -> vector<8x256xf32>
    %c3 = arith.constant 3 : index
    %c0_17 = arith.constant 0 : index
    %29 = vector.load %arg6[%c3, %c0_17] : memref<9x256xf32, #tpu.memory_space<vmem>>, vector<1x256xf32>
    %30 = vector.broadcast %29 : vector<1x256xf32> to vector<8x256xf32>
    %31 = arith.mulf %28, %30 : vector<8x256xf32>
    %c24 = arith.constant 24 : index
    %c0_18 = arith.constant 0 : index
    %32 = vector.load %arg8[%c24, %c0_18] : memref<72x256xf32, #tpu.memory_space<vmem>>, vector<8x256xf32>
    tpu.vector_store %arg8[%c24, %c0_18], %31 {strides = array<i32>} : memref<72x256xf32, #tpu.memory_space<vmem>>, vector<8x256xf32>,
    %c32 = arith.constant 32 : index
    %c0_19 = arith.constant 0 : index
    %33 = vector.load %arg8[%c32, %c0_19] : memref<72x256xf32, #tpu.memory_space<vmem>>, vector<8x256xf32>
    tpu.vector_store %arg8[%c32, %c0_19], %12 {strides = array<i32>} : memref<72x256xf32, #tpu.memory_space<vmem>>, vector<8x256xf32>,
    %c255_i32 = arith.constant 255 : i32
    %34 = tpu.dynamic_rotate %12 by %c255_i32 dim 1 : vector<8x256xf32>, i32 -> vector<8x256xf32>
    %c5 = arith.constant 5 : index
    %c0_20 = arith.constant 0 : index
    %35 = vector.load %arg6[%c5, %c0_20] : memref<9x256xf32, #tpu.memory_space<vmem>>, vector<1x256xf32>
    %36 = vector.broadcast %35 : vector<1x256xf32> to vector<8x256xf32>
    %37 = arith.mulf %34, %36 : vector<8x256xf32>
    %c40 = arith.constant 40 : index
    %c0_21 = arith.constant 0 : index
    %38 = vector.load %arg8[%c40, %c0_21] : memref<72x256xf32, #tpu.memory_space<vmem>>, vector<8x256xf32>
    tpu.vector_store %arg8[%c40, %c0_21], %37 {strides = array<i32>} : memref<72x256xf32, #tpu.memory_space<vmem>>, vector<8x256xf32>,
    %c241_i32 = arith.constant 241 : i32
    %39 = tpu.dynamic_rotate %12 by %c241_i32 dim 1 : vector<8x256xf32>, i32 -> vector<8x256xf32>
    %c6 = arith.constant 6 : index
    %c0_22 = arith.constant 0 : index
    %40 = vector.load %arg6[%c6, %c0_22] : memref<9x256xf32, #tpu.memory_space<vmem>>, vector<1x256xf32>
    %41 = vector.broadcast %40 : vector<1x256xf32> to vector<8x256xf32>
    %42 = arith.mulf %39, %41 : vector<8x256xf32>
    %c48 = arith.constant 48 : index
    %c0_23 = arith.constant 0 : index
    %43 = vector.load %arg8[%c48, %c0_23] : memref<72x256xf32, #tpu.memory_space<vmem>>, vector<8x256xf32>
    tpu.vector_store %arg8[%c48, %c0_23], %42 {strides = array<i32>} : memref<72x256xf32, #tpu.memory_space<vmem>>, vector<8x256xf32>,
    %c240_i32 = arith.constant 240 : i32
    %44 = tpu.dynamic_rotate %12 by %c240_i32 dim 1 : vector<8x256xf32>, i32 -> vector<8x256xf32>
    %c7 = arith.constant 7 : index
    %c0_24 = arith.constant 0 : index
    %45 = vector.load %arg6[%c7, %c0_24] : memref<9x256xf32, #tpu.memory_space<vmem>>, vector<1x256xf32>
    %46 = vector.broadcast %45 : vector<1x256xf32> to vector<8x256xf32>
    %47 = arith.mulf %44, %46 : vector<8x256xf32>
    %c56 = arith.constant 56 : index
    %c0_25 = arith.constant 0 : index
    %48 = vector.load %arg8[%c56, %c0_25] : memref<72x256xf32, #tpu.memory_space<vmem>>, vector<8x256xf32>
    tpu.vector_store %arg8[%c56, %c0_25], %47 {strides = array<i32>} : memref<72x256xf32, #tpu.memory_space<vmem>>, vector<8x256xf32>,
    %c239_i32 = arith.constant 239 : i32
    %49 = tpu.dynamic_rotate %12 by %c239_i32 dim 1 : vector<8x256xf32>, i32 -> vector<8x256xf32>
    %c8_26 = arith.constant 8 : index
    %c0_27 = arith.constant 0 : index
    %50 = vector.load %arg6[%c8_26, %c0_27] : memref<9x256xf32, #tpu.memory_space<vmem>>, vector<1x256xf32>
    %51 = vector.broadcast %50 : vector<1x256xf32> to vector<8x256xf32>
    %52 = arith.mulf %49, %51 : vector<8x256xf32>
    %c64 = arith.constant 64 : index
    %c0_28 = arith.constant 0 : index
    %53 = vector.load %arg8[%c64, %c0_28] : memref<72x256xf32, #tpu.memory_space<vmem>>, vector<8x256xf32>
    tpu.vector_store %arg8[%c64, %c0_28], %52 {strides = array<i32>} : memref<72x256xf32, #tpu.memory_space<vmem>>, vector<8x256xf32>,
    %c0_29 = arith.constant 0 : index
    %c0_30 = arith.constant 0 : index
    %54 = vector.load %arg4[%c0_29, %c0_30] : memref<8x72xf32, #tpu.memory_space<vmem>>, vector<8x72xf32>
    %c0_31 = arith.constant 0 : index
    %c0_32 = arith.constant 0 : index
    %55 = vector.load %arg8[%c0_31, %c0_32] : memref<72x256xf32, #tpu.memory_space<vmem>>, vector<72x256xf32>
    %cst_33 = arith.constant dense<0.000000e+00> : vector<8x256xf32>
    %56 = tpu.matmul %54, %55, %cst_33 {dimension_numbers = #tpu.dot_dimension_numbers<[1], [0], [0], [1], [0, 0, 1, 1], [], []>} : vector<8x72xf32>, vector<72x256xf32>, vector<8x256xf32> -> vector<8x256xf32>
    %cst_34 = arith.constant 0.000000e+00 : f32
    %57 = vector.broadcast %cst_34 : f32 to vector<8x256xf32>
    %58 = arith.maximumf %56, %57 : vector<8x256xf32>
    %59 = tpu.concatenate %58, %0 in 0 : vector<8x256xf32>, vector<8x256xf32> -> vector<16x256xf32>
    %c0_35 = arith.constant 0 : index
    %c0_36 = arith.constant 0 : index
    %60 = vector.load %arg5[%c0_35, %c0_36] : memref<8x16xf32, #tpu.memory_space<vmem>>, vector<8x16xf32>
    %cst_37 = arith.constant dense<0.000000e+00> : vector<8x256xf32>
    %61 = tpu.matmul %60, %59, %cst_37 {dimension_numbers = #tpu.dot_dimension_numbers<[1], [0], [0], [1], [0, 0, 1, 1], [], []>} : vector<8x16xf32>, vector<16x256xf32>, vector<8x256xf32> -> vector<8x256xf32>
    %c0_38 = arith.constant 0 : index
    %c0_39 = arith.constant 0 : index
    %62 = vector.load %arg7[%c0_38, %c0_39] : memref<8x256xf32, #tpu.memory_space<vmem>>, vector<8x256xf32>
    tpu.vector_store %arg7[%c0_38, %c0_39], %61 {strides = array<i32>} : memref<8x256xf32, #tpu.memory_space<vmem>>, vector<8x256xf32>,
    return
  }
  func.func @transform_0(%arg0: i32) -> (i32, i32) {
    %c0_i32 = arith.constant 0 : i32
    %c0_i32_0 = arith.constant 0 : i32
    return %c0_i32, %arg0 : i32, i32
  }
  func.func @transform_1(%arg0: i32) -> (i32, i32) {
    %c0_i32 = arith.constant 0 : i32
    %c0_i32_0 = arith.constant 0 : i32
    %c0_i32_1 = arith.constant 0 : i32
    return %c0_i32, %c0_i32_0 : i32, i32
  }
  func.func @transform_2(%arg0: i32) -> (i32, i32) {
    %c0_i32 = arith.constant 0 : i32
    %c0_i32_0 = arith.constant 0 : i32
    %c0_i32_1 = arith.constant 0 : i32
    return %c0_i32, %c0_i32_0 : i32, i32
  }
  func.func @transform_3(%arg0: i32) -> (i32, i32) {
    %c0_i32 = arith.constant 0 : i32
    %c0_i32_0 = arith.constant 0 : i32
    %c0_i32_1 = arith.constant 0 : i32
    return %c0_i32, %c0_i32_0 : i32, i32
  }
  func.func @transform_4(%arg0: i32) -> (i32, i32) {
    %c0_i32 = arith.constant 0 : i32
    %c0_i32_0 = arith.constant 0 : i32
    %c0_i32_1 = arith.constant 0 : i32
    return %c0_i32, %c0_i32_0 : i32, i32
  }
  func.func @transform_5(%arg0: i32) -> (i32, i32) {
    %c0_i32 = arith.constant 0 : i32
    %c0_i32_0 = arith.constant 0 : i32
    %c0_i32_1 = arith.constant 0 : i32
    return %c0_i32, %c0_i32_0 : i32, i32
  }
  func.func @transform_6(%arg0: i32) -> (i32, i32) {
    %c0_i32 = arith.constant 0 : i32
    %c0_i32_0 = arith.constant 0 : i32
    return %c0_i32, %arg0 : i32, i32
  }
}

</mosaic_0001>

<llo_original>
// kernel: residual_forward.1
$region0: #{residual_forward.1}
  #allocation0 [shape = 'u32[]', space=smem, size = 0x4, offset = 0x4, fixed_abs, tag = 'smem constant byte address 0x4 - core index']
  #allocation1 [shape = 'u32[72,128]{1,0:T(1,128)}', space=vmem, size = 0x9000, scoped, tag = 'internal scratch']
  #allocation2 [shape = 'f32[72,256]{1,0:T(8,128)}', space=vmem, size = 0x12000, scoped, tag = 'scratch operand']
  %s0 = inlined_call_operand.vmem [shape: f32[8,512], index: 0, kind: input, shape index: {}]
  %s1 = inlined_call_operand.vmem [shape: f32[8,2], index: 1, kind: input, shape index: {}]
  %s2 = inlined_call_operand.vmem [shape: f32[8,8], index: 2, kind: input, shape index: {}]
  %s3 = inlined_call_operand.vmem [shape: f32[8,72], index: 3, kind: input, shape index: {}]
  %s4 = inlined_call_operand.vmem [shape: f32[8,16], index: 4, kind: input, shape index: {}]
  %s5 = inlined_call_operand.vmem [shape: f32[9,256], index: 5, kind: input, shape index: {}]
  %s6 = inlined_call_operand.vmem [shape: f32[8,512], index: 6, kind: output, shape index: {}]
  %s7 = sld [smem:[#allocation0]]
  $region57: #{residual_forward.1} parent=0
    _
  %s9 = ssub.s32 1, %s7
  %s10 = scalar_select 0, %s9, %s7
  loop: start=0, step=1, limit=4
  $region2: #{residual_forward.1} parent=0 // loop_pre_header
    _
  $region3: #{residual_forward.1} parent=0 // loop_header
    %s12 = sphi 0, %s16
    %p13 = scmp.ge.s32.totalorder %s12, 4
    %s22 = sphi 0, %s24
    %s25 = sphi 0, %s22
    %s26 = sphi 0, %s25
    %s42 = sphi 0, %s26
    %s46 = sphi 0, %s46
    %s48 = sphi 0, %s46
    %s49 = sphi 0, %s48
    %s63 = sphi 0, %s49
    %s67 = sphi 0, %s67
    %s69 = sphi 0, %s67
    %s70 = sphi 0, %s69
    %s84 = sphi 0, %s70
    %s88 = sphi 0, %s88
    %s90 = sphi 0, %s88
    %s91 = sphi 0, %s90
    %s105 = sphi 0, %s91
    %s109 = sphi 0, %s109
    %s111 = sphi 0, %s109
    %s112 = sphi 0, %s111
    %s126 = sphi 0, %s112
    %s130 = sphi 0, %s130
    %s132 = sphi 0, %s130
    %s133 = sphi 0, %s132
    %s147 = sphi 0, %s133
    %s153 = sphi 0, %s155
    %s156 = sphi 0, %s153
    %s157 = sphi 0, %s156
    %s173 = sphi 0, %s157
  $region4: #{residual_forward.1} parent=0 // loop_header_branch
    %15 = sbr.rel (%p13) target = $region8
  $region5: #{residual_forward.1} parent=0 // loop_body
    %s17 = ssub.s32 %s12, 1
    %s18 = ssub.s32 %s12, 2
    %s19 = sadd.s32 %s12, 1
    %s20 = ssub.s32 %s12, %s19
    %p21 = scmp.eq.s32.totalorder %s20, 0
    %s23 = sadd.s32 %s22, 1
    %s24 = scalar_select %p21, %s22, %s23
    %p27 = pneg %p21
    %p28 = scmp.eq.s32.totalorder %s12, 1
    %p29 = por %p27, %p28
    %p30 = scmp.ne.s32.totalorder %s22, %s25
    %p31 = scmp.eq.s32.totalorder %s12, 0
    %p32 = por %p30, %p31
    %p33 = scmp.ne.s32.totalorder %s22, %s25
    %p34 = scmp.eq.s32.totalorder %s17, 1
    %p35 = por %p33, %p34
    %p36 = scmp.ne.s32.totalorder %s25, %s26
    %p37 = scmp.eq.s32.totalorder %s17, 0
    %p38 = por %p36, %p37
    %p39 = scmp.ne.s32.totalorder %s25, %s26
    %p40 = scmp.eq.s32.totalorder %s18, 1
    %p41 = por %p39, %p40
    %p43 = scmp.ne.s32.totalorder %s26, %s42
    %p44 = scmp.eq.s32.totalorder %s18, 0
    %p45 = por %p43, %p44
    %s47 = sadd.s32 %s46, 1
    %p50 = scmp.eq.s32.totalorder %s12, 1
    %p51 = scmp.ne.s32.totalorder %s46, %s48
    %p52 = scmp.eq.s32.totalorder %s12, 0
    %p53 = por %p51, %p52
    %p54 = scmp.ne.s32.totalorder %s46, %s48
    %p55 = scmp.eq.s32.totalorder %s17, 1
    %p56 = por %p54, %p55
    %p57 = scmp.ne.s32.totalorder %s48, %s49
    %p58 = scmp.eq.s32.totalorder %s17, 0
    %p59 = por %p57, %p58
    %p60 = scmp.ne.s32.totalorder %s48, %s49
    %p61 = scmp.eq.s32.totalorder %s18, 1
    %p62 = por %p60, %p61
    %p64 = scmp.ne.s32.totalorder %s49, %s63
    %p65 = scmp.eq.s32.totalorder %s18, 0
    %p66 = por %p64, %p65
    %s68 = sadd.s32 %s67, 1
    %p71 = scmp.eq.s32.totalorder %s12, 1
    %p72 = scmp.ne.s32.totalorder %s67, %s69
    %p73 = scmp.eq.s32.totalorder %s12, 0
    %p74 = por %p72, %p73
    %p75 = scmp.ne.s32.totalorder %s67, %s69
    %p76 = scmp.eq.s32.totalorder %s17, 1
    %p77 = por %p75, %p76
    %p78 = scmp.ne.s32.totalorder %s69, %s70
    %p79 = scmp.eq.s32.totalorder %s17, 0
    %p80 = por %p78, %p79
    %p81 = scmp.ne.s32.totalorder %s69, %s70
    %p82 = scmp.eq.s32.totalorder %s18, 1
    %p83 = por %p81, %p82
    %p85 = scmp.ne.s32.totalorder %s70, %s84
    %p86 = scmp.eq.s32.totalorder %s18, 0
    %p87 = por %p85, %p86
    %s89 = sadd.s32 %s88, 1
    %p92 = scmp.eq.s32.totalorder %s12, 1
    %p93 = scmp.ne.s32.totalorder %s88, %s90
    %p94 = scmp.eq.s32.totalorder %s12, 0
    %p95 = por %p93, %p94
    %p96 = scmp.ne.s32.totalorder %s88, %s90
    %p97 = scmp.eq.s32.totalorder %s17, 1
    %p98 = por %p96, %p97
    %p99 = scmp.ne.s32.totalorder %s90, %s91
    %p100 = scmp.eq.s32.totalorder %s17, 0
    %p101 = por %p99, %p100
    %p102 = scmp.ne.s32.totalorder %s90, %s91
    %p103 = scmp.eq.s32.totalorder %s18, 1
    %p104 = por %p102, %p103
    %p106 = scmp.ne.s32.totalorder %s91, %s105
    %p107 = scmp.eq.s32.totalorder %s18, 0
    %p108 = por %p106, %p107
    %s110 = sadd.s32 %s109, 1
    %p113 = scmp.eq.s32.totalorder %s12, 1
    %p114 = scmp.ne.s32.totalorder %s109, %s111
    %p115 = scmp.eq.s32.totalorder %s12, 0
    %p116 = por %p114, %p115
    %p117 = scmp.ne.s32.totalorder %s109, %s111
    %p118 = scmp.eq.s32.totalorder %s17, 1
    %p119 = por %p117, %p118
    %p120 = scmp.ne.s32.totalorder %s111, %s112
    %p121 = scmp.eq.s32.totalorder %s17, 0
    %p122 = por %p120, %p121
    %p123 = scmp.ne.s32.totalorder %s111, %s112
    %p124 = scmp.eq.s32.totalorder %s18, 1
    %p125 = por %p123, %p124
    %p127 = scmp.ne.s32.totalorder %s112, %s126
    %p128 = scmp.eq.s32.totalorder %s18, 0
    %p129 = por %p127, %p128
    %s131 = sadd.s32 %s130, 1
    %p134 = scmp.eq.s32.totalorder %s12, 1
    %p135 = scmp.ne.s32.totalorder %s130, %s132
    %p136 = scmp.eq.s32.totalorder %s12, 0
    %p137 = por %p135, %p136
    %p138 = scmp.ne.s32.totalorder %s130, %s132
    %p139 = scmp.eq.s32.totalorder %s17, 1
    %p140 = por %p138, %p139
    %p141 = scmp.ne.s32.totalorder %s132, %s133
    %p142 = scmp.eq.s32.totalorder %s17, 0
    %p143 = por %p141, %p142
    %p144 = scmp.ne.s32.totalorder %s132, %s133
    %p145 = scmp.eq.s32.totalorder %s18, 1
    %p146 = por %p144, %p145
    %p148 = scmp.ne.s32.totalorder %s133, %s147
    %p149 = scmp.eq.s32.totalorder %s18, 0
    %p150 = por %p148, %p149
    %s151 = ssub.s32 %s12, %s19
    %p152 = scmp.eq.s32.totalorder %s151, 0
    %s154 = sadd.s32 %s153, 1
    %s155 = scalar_select %p152, %s153, %s154
    %p158 = pneg %p152
    %p159 = scmp.eq.s32.totalorder %s12, 1
    %p160 = por %p158, %p159
    %p161 = scmp.ne.s32.totalorder %s153, %s156
    %p162 = scmp.eq.s32.totalorder %s12, 0
    %p163 = por %p161, %p162
    %p164 = scmp.ne.s32.totalorder %s153, %s156
    %p165 = scmp.eq.s32.totalorder %s17, 1
    %p166 = por %p164, %p165
    %p167 = scmp.ne.s32.totalorder %s156, %s157
    %p168 = scmp.eq.s32.totalorder %s17, 0
    %p169 = por %p167, %p168
    %p170 = scmp.ne.s32.totalorder %s156, %s157
    %p171 = scmp.eq.s32.totalorder %s18, 1
    %p172 = por %p170, %p171
    %p174 = scmp.ne.s32.totalorder %s157, %s173
    %p175 = scmp.eq.s32.totalorder %s18, 0
    %p176 = por %p174, %p175
    %p177 = scmp.le.s32.totalorder 1, %s12
    %p178 = scmp.lt.s32.totalorder %s12, 3
    %p179 = pnand %p177, %p178
    %p180 = pneg %p179
    // Predicated region
    $region9: #{residual_forward.1} parent=5 // pred_check
      _
    $region10: #{residual_forward.1} parent=5 // pred_check_branch
      %182 = sbr.rel (%p179) target = $region12
    $region11: #{residual_forward.1} parent=5 // pred_region
      %s183 = ssub.s32 %s12, 1
      // Predicated region
      $region13: #{residual_forward.1} parent=11 // pred_check
        %p184 = pneg %p59
      $region14: #{residual_forward.1} parent=11 // pred_check_branch
        %186 = sbr.rel (%p184) target = $region16
      $region15: #{residual_forward.1} parent=11 // pred_region
        _
      $region16: #{residual_forward.1} parent=11 // pred_fallthru
        _
      // Predicated region
      $region17: #{residual_forward.1} parent=11 // pred_check
        %p187 = pneg %p80
      $region18: #{residual_forward.1} parent=11 // pred_check_branch
        %189 = sbr.rel (%p187) target = $region20
      $region19: #{residual_forward.1} parent=11 // pred_region
        _
      $region20: #{residual_forward.1} parent=11 // pred_fallthru
        _
      // Predicated region
      $region21: #{residual_forward.1} parent=11 // pred_check
        %p190 = pneg %p101
      $region22: #{residual_forward.1} parent=11 // pred_check_branch
        %192 = sbr.rel (%p190) target = $region24
      $region23: #{residual_forward.1} parent=11 // pred_region
        _
      $region24: #{residual_forward.1} parent=11 // pred_fallthru
        _
      // Predicated region
      $region25: #{residual_forward.1} parent=11 // pred_check
        %p193 = pneg %p122
      $region26: #{residual_forward.1} parent=11 // pred_check_branch
        %195 = sbr.rel (%p193) target = $region28
      $region27: #{residual_forward.1} parent=11 // pred_region
        _
      $region28: #{residual_forward.1} parent=11 // pred_fallthru
        _
      // Predicated region
      $region29: #{residual_forward.1} parent=11 // pred_check
        %p196 = pneg %p143
      $region30: #{residual_forward.1} parent=11 // pred_check_branch
        %198 = sbr.rel (%p196) target = $region32
      $region31: #{residual_forward.1} parent=11 // pred_region
        _
      $region32: #{residual_forward.1} parent=11 // pred_fallthru
        _
    $region12: #{residual_forward.1} parent=5 // pred_fallthru
      _
    %p199 = scmp.lt.s32.totalorder %s12, 2
    // Predicated region
    $region33: #{residual_forward.1} parent=5 // pred_check
      %p200 = pneg %p199
    $region34: #{residual_forward.1} parent=5 // pred_check_branch
      %202 = sbr.rel (%p200) target = $region36
    $region35: #{residual_forward.1} parent=5 // pred_region
      // Predicated region
      $region37: #{residual_forward.1} parent=35 // pred_check
        %p203 = pneg %p32
      $region38: #{residual_forward.1} parent=35 // pred_check_branch
        %205 = sbr.rel (%p203) target = $region40
      $region39: #{residual_forward.1} parent=35 // pred_region
        %s206 = smul.u32 2, %s12
        %p207 = scmp.lt.s32.totalorder %s206, 3
        %s208 = scalar_select %p207, %s206, 3
        %s209 = smul.addr %s208, 8
        %s210 = scalar_lea.vmem %s0, %s209
        %s211 = smul.u32 2, %s12
      $region40: #{residual_forward.1} parent=35 // pred_fallthru
        _
    $region36: #{residual_forward.1} parent=5 // pred_fallthru
      _
    %p212 = scmp.le.s32.totalorder 1, %s12
    %p213 = scmp.lt.s32.totalorder %s12, 3
    %p214 = pnand %p212, %p213
    %p215 = pneg %p214
    // Predicated region
    $region41: #{residual_forward.1} parent=5 // pred_check
      _
    $region42: #{residual_forward.1} parent=5 // pred_check_branch
      %217 = sbr.rel (%p214) target = $region44
    $region43: #{residual_forward.1} parent=5 // pred_region
      %s218 = ssub.s32 %s12, 1
      %s219 = smul.u32 2, %s17
      %p220 = scmp.lt.s32.totalorder %s219, 3
      %s221 = scalar_select %p220, %s219, 3
      %s222 = smul.addr %s221, 8
      %s223 = scalar_lea.vmem %s0, %s222
      %p224 = pneg %p38
      %p225 = pneg %p35
      %p226 = pneg %p59
      %p227 = pneg %p56
      %p228 = pneg %p80
      %p229 = pneg %p77
      %p230 = pneg %p101
      %p231 = pneg %p98
      %p232 = pneg %p122
      %p233 = pneg %p119
      %p234 = pneg %p143
      %p235 = pneg %p140
      %p236 = pneg %p169
      %p237 = pneg %p166
      %s238 = smul.u32 2, %s17
      %p239 = scmp.lt.s32.totalorder %s238, 3
      %s240 = scalar_select %p239, %s238, 3
      %s241 = smul.addr %s240, 8
      %s242 = scalar_lea.vmem %s6, %s241
      %s243 = smul.u32 2, %s17
      %p244 = scmp.lt.s32.totalorder %s243, 3
      %s245 = scalar_select %p244, %s243, 3
      %s246 = smul.addr %s245, 8
      %s247 = scalar_lea.vmem %s0, %s246
      %s248 = smul.u32 2, %s17
      %s249 = smul.u32 2, %s17
      %p250 = scmp.lt.s32.totalorder %s249, 3
      %s251 = scalar_select %p250, %s249, 3
      %s252 = smul.addr %s251, 8
      %s253 = scalar_lea.vmem %s6, %s252
      %s254 = smul.u32 2, %s17
      %v255 = vld [vmem:[%s247] sm:$0xff]
      %v256 = vld [vmem:[%s247 + $0x8] sm:$0xff]
      %v257 = vld [vmem:[%s1] sm:$0xff]
      %259 = vset.pattern.permute.xlu0 0
      %260 = vperm.xlu0 %259, %v257
      %v261 = vpop.permute.xlu0 %260
      %v263 = vmul.f32 %v255, %v261
      %v264 = vmul.f32 %v256, %v261
      %265 = vset.pattern.permute.xlu0 1
      %266 = vperm.xlu0 %265, %v257
      %v267 = vpop.permute.xlu0 %266
      %v269 = vadd.f32 %v263, %v267
      %v270 = vadd.f32 %v264, %v267
      %v271 = vmax.f32 %v269, 0.0
      %v272 = vmax.f32 %v270, 0.0
      %v273 = vld [vmem:[%s2] sm:$0xff]
      %vm274 = vcmask 64512
      %v276 = vsel %vm274, %v273, 0
      %278 = vmatpush.msra.mxu0 0.0
      %279 = vmatpush.msra.mxu0 0.0
      %280 = vmatpush.msra.mxu0 0.0
      %281 = vmatpush.msra.mxu0 0.0
      %282 = vmatpush.msra.mxu0 0.0
      %283 = vmatpush.msra.mxu0 0.0
      %284 = vmatpush.msra.mxu0 0.0
      %285 = vmatpush.msra.mxu0 0.0
      %286 = vmatpush.msra.mxu0 0.0
      %287 = vmatpush.msra.mxu0 0.0
      %288 = vmatpush.msra.mxu0 0.0
      %289 = vmatpush.msra.mxu0 0.0
      %290 = vmatpush.msra.mxu0 0.0
      %291 = vmatpush.msra.mxu0 0.0
      %292 = vmatpush.msra.mxu0 0.0
      %293 = vmatpush.msra.mxu0 %v271
      %294 = vmatmul.f32.gmra.mxu0 %v276
      %v295 = vpop.f32.mrf.mxu0
      %v296 = vadd.f32 0.0, %v295
      %297 = vdwg.mxu0
      %298 = vmatpush.msra.mxu0 0.0
      %299 = vmatpush.msra.mxu0 0.0
      %300 = vmatpush.msra.mxu0 0.0
      %301 = vmatpush.msra.mxu0 0.0
      %302 = vmatpush.msra.mxu0 0.0
      %303 = vmatpush.msra.mxu0 0.0
      %304 = vmatpush.msra.mxu0 0.0
      %305 = vmatpush.msra.mxu0 0.0
      %306 = vmatpush.msra.mxu0 0.0
      %307 = vmatpush.msra.mxu0 0.0
      %308 = vmatpush.msra.mxu0 0.0
      %309 = vmatpush.msra.mxu0 0.0
      %310 = vmatpush.msra.mxu0 0.0
      %311 = vmatpush.msra.mxu0 0.0
      %312 = vmatpush.msra.mxu0 0.0
      %313 = vmatpush.msra.mxu0 %v272
      %314 = vmatmul.f32.gmra.mxu0 %v276
      %v315 = vpop.f32.mrf.mxu0
      %v316 = vadd.f32 0.0, %v315
      %317 = vdwg.mxu0
      %v318 = vmax.f32 %v296, 0.0
      %v319 = vmax.f32 %v316, 0.0
      %320 = vrot.lane.b32.xlu0 %v318, 17
      %v321 = vpop.permute.xlu0 %320
      %322 = vrot.lane.b32.xlu0 %v319, 17
      %v323 = vpop.permute.xlu0 %322
      %v324 = vlaneseq
      %v325 = vand.u32 %v324, 127
      %vm326 = vcmp.lt.s32.totalorder %v325, 17
      %v327 = vsel %vm326, %v321, %v323
      %v328 = vsel %vm326, %v323, %v321
      %v329 = vld [vmem:[%s5] ss:$8 sm:$0x3]
      %v331 = vperm.slane %v329, 0
      %v332 = vperm.slane %v329, 1
      %v335 = vmul.f32 %v328, %v331
      %v336 = vmul.f32 %v327, %v332
      %337 = vst [vmem:[#allocation2] sm:$0xff] %v335
      %338 = vst [vmem:[#allocation2 + $0x8] sm:$0xff] %v336
      %339 = vrot.lane.b32.xlu0 %v318, 16
      %v340 = vpop.permute.xlu0 %339
      %341 = vrot.lane.b32.xlu0 %v319, 16
      %v342 = vpop.permute.xlu0 %341
      %vm343 = vcmp.lt.s32.totalorder %v325, 16
      %v344 = vsel %vm343, %v340, %v342
      %v345 = vsel %vm343, %v342, %v340
      %s346 = scalar_lea.vmem %s5, 1
      %v347 = vld [vmem:[%s346] ss:$8 sm:$0x3]
      %v349 = vperm.slane %v347, 0
      %v350 = vperm.slane %v347, 1
      %v353 = vmul.f32 %v345, %v349
      %v354 = vmul.f32 %v344, %v350
      %355 = vst [vmem:[#allocation2 + $0x10] sm:$0xff] %v353
      %356 = vst [vmem:[#allocation2 + $0x18] sm:$0xff] %v354
      %357 = vrot.lane.b32.xlu0 %v318, 15
      %v358 = vpop.permute.xlu0 %357
      %359 = vrot.lane.b32.xlu0 %v319, 15
      %v360 = vpop.permute.xlu0 %359
      %vm361 = vcmp.lt.s32.totalorder %v325, 15
      %v362 = vsel %vm361, %v358, %v360
      %v363 = vsel %vm361, %v360, %v358
      %s364 = scalar_lea.vmem %s5, 2
      %v365 = vld [vmem:[%s364] ss:$8 sm:$0x3]
      %v367 = vperm.slane %v365, 0
      %v368 = vperm.slane %v365, 1
      %v371 = vmul.f32 %v363, %v367
      %v372 = vmul.f32 %v362, %v368
      %373 = vst [vmem:[#allocation2 + $0x20] sm:$0xff] %v371
      %374 = vst [vmem:[#allocation2 + $0x28] sm:$0xff] %v372
      %375 = vrot.lane.b32.xlu0 %v318, 1
      %v376 = vpop.permute.xlu0 %375
      %377 = vrot.lane.b32.xlu0 %v319, 1
      %v378 = vpop.permute.xlu0 %377
      %vm379 = vcmp.lt.s32.totalorder %v325, 1
      %v380 = vsel %vm379, %v376, %v378
      %v381 = vsel %vm379, %v378, %v376
      %s382 = scalar_lea.vmem %s5, 3
      %v383 = vld [vmem:[%s382] ss:$8 sm:$0x3]
      %v385 = vperm.slane %v383, 0
      %v386 = vperm.slane %v383, 1
      %v389 = vmul.f32 %v381, %v385
      %v390 = vmul.f32 %v380, %v386
      %391 = vst [vmem:[#allocation2 + $0x30] sm:$0xff] %v389
      %392 = vst [vmem:[#allocation2 + $0x38] sm:$0xff] %v390
      %393 = vst [vmem:[#allocation2 + $0x40] sm:$0xff] %v318
      %394 = vst [vmem:[#allocation2 + $0x48] sm:$0xff] %v319
      %395 = vrot.lane.b32.xlu0 %v318, 127
      %v396 = vpop.permute.xlu0 %395
      %397 = vrot.lane.b32.xlu0 %v319, 127
      %v398 = vpop.permute.xlu0 %397
      %vm399 = vcmp.lt.s32.totalorder %v325, 127
      %v400 = vsel %vm399, %v396, %v398
      %v401 = vsel %vm399, %v398, %v396
      %s402 = scalar_lea.vmem %s5, 5
      %v403 = vld [vmem:[%s402] ss:$8 sm:$0x3]
      %v405 = vperm.slane %v403, 0
      %v406 = vperm.slane %v403, 1
      %v409 = vmul.f32 %v400, %v405
      %v410 = vmul.f32 %v401, %v406
      %411 = vst [vmem:[#allocation2 + $0x50] sm:$0xff] %v409
      %412 = vst [vmem:[#allocation2 + $0x58] sm:$0xff] %v410
      %413 = vrot.lane.b32.xlu0 %v318, 113
      %v414 = vpop.permute.xlu0 %413
      %415 = vrot.lane.b32.xlu0 %v319, 113
      %v416 = vpop.permute.xlu0 %415
      %vm417 = vcmp.lt.s32.totalorder %v325, 113
      %v418 = vsel %vm417, %v414, %v416
      %v419 = vsel %vm417, %v416, %v414
      %s420 = scalar_lea.vmem %s5, 6
      %v421 = vld [vmem:[%s420] ss:$8 sm:$0x3]
      %v423 = vperm.slane %v421, 0
      %v424 = vperm.slane %v421, 1
      %v427 = vmul.f32 %v418, %v423
      %v428 = vmul.f32 %v419, %v424
      %429 = vst [vmem:[#allocation2 + $0x60] sm:$0xff] %v427
      %430 = vst [vmem:[#allocation2 + $0x68] sm:$0xff] %v428
      %431 = vrot.lane.b32.xlu0 %v318, 112
      %v432 = vpop.permute.xlu0 %431
      %433 = vrot.lane.b32.xlu0 %v319, 112
      %v434 = vpop.permute.xlu0 %433
      %vm435 = vcmp.lt.s32.totalorder %v325, 112
      %v436 = vsel %vm435, %v432, %v434
      %v437 = vsel %vm435, %v434, %v432
      %s438 = scalar_lea.vmem %s5, 7
      %v439 = vld [vmem:[%s438] ss:$8 sm:$0x3]
      %v441 = vperm.slane %v439, 0
      %v442 = vperm.slane %v439, 1
      %v445 = vmul.f32 %v436, %v441
      %v446 = vmul.f32 %v437, %v442
      %447 = vst [vmem:[#allocation2 + $0x70] sm:$0xff] %v445
      %448 = vst [vmem:[#allocation2 + $0x78] sm:$0xff] %v446
      %449 = vrot.lane.b32.xlu0 %v318, 111
      %v450 = vpop.permute.xlu0 %449
      %451 = vrot.lane.b32.xlu0 %v319, 111
      %v452 = vpop.permute.xlu0 %451
      %vm453 = vcmp.lt.s32.totalorder %v325, 111
      %v454 = vsel %vm453, %v450, %v452
      %v455 = vsel %vm453, %v452, %v450
      %s456 = scalar_lea.vmem %s5, 16
      %v457 = vld [vmem:[%s456] ss:$8 sm:$0x3]
      %v459 = vperm.slane %v457, 0
      %v460 = vperm.slane %v457, 1
      %v463 = vmul.f32 %v454, %v459
      %v464 = vmul.f32 %v455, %v460
      %465 = vst [vmem:[#allocation2 + $0x80] sm:$0xff] %v463
      %466 = vst [vmem:[#allocation2 + $0x88] sm:$0xff] %v464
      %v467 = vld [vmem:[%s3] sm:$0xff]
      %v468 = vld [vmem:[#allocation2] sm:$0xff]
      %v469 = vld [vmem:[#allocation2 + $0x8] sm:$0xff]
      %v470 = vld [vmem:[#allocation2 + $0x10] sm:$0xff]
      %v471 = vld [vmem:[#allocation2 + $0x18] sm:$0xff]
      %v472 = vld [vmem:[#allocation2 + $0x20] sm:$0xff]
      %v473 = vld [vmem:[#allocation2 + $0x28] sm:$0xff]
      %v474 = vld [vmem:[#allocation2 + $0x30] sm:$0xff]
      %v475 = vld [vmem:[#allocation2 + $0x38] sm:$0xff]
      %v476 = vld [vmem:[#allocation2 + $0x40] sm:$0xff]
      %v477 = vld [vmem:[#allocation2 + $0x48] sm:$0xff]
      %v478 = vld [vmem:[#allocation2 + $0x50] sm:$0xff]
      %v479 = vld [vmem:[#allocation2 + $0x58] sm:$0xff]
      %v480 = vld [vmem:[#allocation2 + $0x60] sm:$0xff]
      %v481 = vld [vmem:[#allocation2 + $0x68] sm:$0xff]
      %v482 = vld [vmem:[#allocation2 + $0x70] sm:$0xff]
      %v483 = vld [vmem:[#allocation2 + $0x78] sm:$0xff]
      %v484 = vld [vmem:[#allocation2 + $0x80] sm:$0xff]
      %v485 = vld [vmem:[#allocation2 + $0x88] sm:$0xff]
      %vm486 = vcmask 588800
      %v488 = vsel %vm486, %v467, 0
      %490 = vmatpush.msra.mxu0 0.0
      %491 = vmatpush.msra.mxu0 0.0
      %492 = vmatpush.msra.mxu0 0.0
      %493 = vmatpush.msra.mxu0 0.0
      %494 = vmatpush.msra.mxu0 0.0
      %495 = vmatpush.msra.mxu0 0.0
      %496 = vmatpush.msra.mxu0 0.0
      %497 = vmatpush.msra.mxu0 %v484
      %498 = vmatpush.msra.mxu0 %v482
      %499 = vmatpush.msra.mxu0 %v480
      %500 = vmatpush.msra.mxu0 %v478
      %501 = vmatpush.msra.mxu0 %v476
      %502 = vmatpush.msra.mxu0 %v474
      %503 = vmatpush.msra.mxu0 %v472
      %504 = vmatpush.msra.mxu0 %v470
      %505 = vmatpush.msra.mxu0 %v468
      %506 = vmatmul.f32.gmra.mxu0 %v488
      %v507 = vpop.f32.mrf.mxu0
      %v508 = vadd.f32 0.0, %v507
      %509 = vdwg.mxu0
      %510 = vmatpush.msra.mxu0 0.0
      %511 = vmatpush.msra.mxu0 0.0
      %512 = vmatpush.msra.mxu0 0.0
      %513 = vmatpush.msra.mxu0 0.0
      %514 = vmatpush.msra.mxu0 0.0
      %515 = vmatpush.msra.mxu0 0.0
      %516 = vmatpush.msra.mxu0 0.0
      %517 = vmatpush.msra.mxu0 %v485
      %518 = vmatpush.msra.mxu0 %v483
      %519 = vmatpush.msra.mxu0 %v481
      %520 = vmatpush.msra.mxu0 %v479
      %521 = vmatpush.msra.mxu0 %v477
      %522 = vmatpush.msra.mxu0 %v475
      %523 = vmatpush.msra.mxu0 %v473
      %524 = vmatpush.msra.mxu0 %v471
      %525 = vmatpush.msra.mxu0 %v469
      %526 = vmatmul.f32.gmra.mxu0 %v488
      %v527 = vpop.f32.mrf.mxu0
      %v528 = vadd.f32 0.0, %v527
      %529 = vdwg.mxu0
      %v530 = vmax.f32 %v508, 0.0
      %v531 = vmax.f32 %v528, 0.0
      %v532 = vld [vmem:[%s4] sm:$0xff]
      %vm533 = vcmask 130048
      %v535 = vsel %vm533, %v532, 0
      %537 = vmatpush.msra.mxu0 0.0
      %538 = vmatpush.msra.mxu0 0.0
      %539 = vmatpush.msra.mxu0 0.0
      %540 = vmatpush.msra.mxu0 0.0
      %541 = vmatpush.msra.mxu0 0.0
      %542 = vmatpush.msra.mxu0 0.0
      %543 = vmatpush.msra.mxu0 0.0
      %544 = vmatpush.msra.mxu0 0.0
      %545 = vmatpush.msra.mxu0 0.0
      %546 = vmatpush.msra.mxu0 0.0
      %547 = vmatpush.msra.mxu0 0.0
      %548 = vmatpush.msra.mxu0 0.0
      %549 = vmatpush.msra.mxu0 0.0
      %550 = vmatpush.msra.mxu0 0.0
      %551 = vmatpush.msra.mxu0 %v255
      %552 = vmatpush.msra.mxu0 %v530
      %553 = vmatmul.f32.gmra.mxu0 %v535
      %v554 = vpop.f32.mrf.mxu0
      %v555 = vadd.f32 0.0, %v554
      %556 = vdwg.mxu0
      %557 = vmatpush.msra.mxu0 0.0
      %558 = vmatpush.msra.mxu0 0.0
      %559 = vmatpush.msra.mxu0 0.0
      %560 = vmatpush.msra.mxu0 0.0
      %561 = vmatpush.msra.mxu0 0.0
      %562 = vmatpush.msra.mxu0 0.0
      %563 = vmatpush.msra.mxu0 0.0
      %564 = vmatpush.msra.mxu0 0.0
      %565 = vmatpush.msra.mxu0 0.0
      %566 = vmatpush.msra.mxu0 0.0
      %567 = vmatpush.msra.mxu0 0.0
      %568 = vmatpush.msra.mxu0 0.0
      %569 = vmatpush.msra.mxu0 0.0
      %570 = vmatpush.msra.mxu0 0.0
      %571 = vmatpush.msra.mxu0 %v256
      %572 = vmatpush.msra.mxu0 %v531
      %573 = vmatmul.f32.gmra.mxu0 %v535
      %v574 = vpop.f32.mrf.mxu0
      %v575 = vadd.f32 0.0, %v574
      %576 = vdwg.mxu0
      %577 = vst [vmem:[%s253] sm:$0xff] %v555
      %578 = vst [vmem:[%s253 + $0x8] sm:$0xff] %v575
      %s579 = smul.u32 2, %s17
      %p580 = scmp.lt.s32.totalorder %s579, 3
      %s581 = scalar_select %p580, %s579, 3
      %s582 = smul.addr %s581, 8
      %s583 = scalar_lea.vmem %s6, %s582
      // Predicated region
      $region45: #{residual_forward.1} parent=43 // pred_check
        %p584 = pneg %p166
      $region46: #{residual_forward.1} parent=43 // pred_check_branch
        %586 = sbr.rel (%p584) target = $region48
      $region47: #{residual_forward.1} parent=43 // pred_region
        %s587 = smul.u32 2, %s17
      $region48: #{residual_forward.1} parent=43 // pred_fallthru
        _
    $region44: #{residual_forward.1} parent=5 // pred_fallthru
      _
    %p588 = scmp.le.s32.totalorder 2, %s12
    // Predicated region
    $region49: #{residual_forward.1} parent=5 // pred_check
      %p589 = pneg %p588
    $region50: #{residual_forward.1} parent=5 // pred_check_branch
      %591 = sbr.rel (%p589) target = $region52
    $region51: #{residual_forward.1} parent=5 // pred_region
      %s592 = ssub.s32 %s12, 2
      // Predicated region
      $region53: #{residual_forward.1} parent=51 // pred_check
        %p593 = pneg %p172
      $region54: #{residual_forward.1} parent=51 // pred_check_branch
        %595 = sbr.rel (%p593) target = $region56
      $region55: #{residual_forward.1} parent=51 // pred_region
        %s596 = smul.u32 2, %s18
        %p597 = scmp.lt.s32.totalorder %s596, 3
        %s598 = scalar_select %p597, %s596, 3
        %s599 = smul.addr %s598, 8
        %s600 = scalar_lea.vmem %s6, %s599
      $region56: #{residual_forward.1} parent=51 // pred_fallthru
        _
    $region52: #{residual_forward.1} parent=5 // pred_fallthru
      _
  $region6: #{residual_forward.1} parent=0 // loop_footer
    %s16 = sadd.s32 1, %s12
  $region7: #{residual_forward.1} parent=0 // loop_footer_branch
    %11 = sbr.rel target = $region3
  $region8: #{residual_forward.1} parent=0 // loop_exit
    _

</llo_original>
